<compile_context>
chip_gen: v7x
topology: tpu7x:2x2x1
jax: 0.10.0
libtpu: 0.0.40
codegen_flags: <defaults>
</compile_context>

<pallas_src>
import jax
import jax.numpy as jnp
from jax.experimental import pallas as pl
from jax.experimental.pallas import tpu as pltpu

_LANE = 128


def _round_up(n, m):
    return ((n + m - 1) // m) * m


def _ensemble_kernel(x_ref, w1_ref, b1_ref, s_ref, w2_ref, o_ref):
    """Fused ensemble forward; everything resident in VMEM, single step.

    x_ref  : (B, D)    bf16  flattened input
    w1_ref : (D, HP)   bf16  W1 of all models concat on hidden axis (+ zero
                             augmented bias columns), lane-padded
    b1_ref : (1, HP)   f32   b1 concat; augmented columns hold 1.0
    s_ref  : (B, HP)   f32   per-sample ensemble weight (repeated per hidden
                             block; raw wei on augmented columns)
    w2_ref : (HP, CP)  bf16  W2 row-stacked with b2 rows appended, lane-padded
    o_ref  : (B, CP)   f32   weighted ensemble logits (lane-dense store)
    """
    # Hidden layer of every client model at once (MXU, f32 accumulation).
    h = jnp.dot(x_ref[...], w1_ref[...], preferred_element_type=jnp.float32)
    h = jnp.maximum(h + b1_ref[...], 0.0)      # f32 VPU (v5e-safe)
    hs = h * s_ref[...]                        # fold per-sample wei into acts
    # (h_all * S) @ [W2_stack ; b2_stack]  ==  sum_i wei_i*(h_i@W2_i + b2_i)
    o_ref[...] = jnp.dot(hs.astype(w2_ref.dtype), w2_ref[...],
                         preferred_element_type=jnp.float32
                         ).astype(o_ref.dtype)


@jax.jit
def _ensemble_pallas(x_flat, w1, b1, w2, b2, wei_batch):
    B, D = x_flat.shape
    num, _, H = w1.shape
    C = w2.shape[2]
    NH = num * H                     # concatenated hidden width
    AUG = NH + num                   # + one "bias carrier" column per model
    HP = _round_up(AUG, _LANE)       # lane-dense hidden/contraction width
    CP = _round_up(C, _LANE)         # lane-dense class width
    f32, bf16 = jnp.float32, jnp.bfloat16

    # ---- layout plumbing (wrapper-side; zero padding only) ---------------
    # W1: (num, D, H) -> (D, num*H), columns grouped per model.
    w1_cat = jnp.transpose(w1, (1, 0, 2)).reshape(D, NH)
    w1p = jnp.zeros((D, HP), bf16).at[:, :NH].set(w1_cat.astype(bf16))
    # b1 concat; augmented columns get 1.0 so relu(x@0 + 1) == 1 exactly,
    # which then carries wei_i * b2_i through the W2 matmul.
    b1p = jnp.zeros((1, HP), f32)
    b1p = b1p.at[0, :NH].set(b1.reshape(NH))
    b1p = b1p.at[0, NH:AUG].set(1.0)
    # Per-sample ensemble weight, repeated across each model's hidden block;
    # raw wei on the augmented bias columns.
    s = jnp.zeros((B, HP), f32)
    s = s.at[:, :NH].set(jnp.repeat(wei_batch, H, axis=1))
    s = s.at[:, NH:AUG].set(wei_batch)
    # W2 row-stacked per model, with b2 rows appended on the augmented rows;
    # all padding columns/rows are zero (correctness of class padding).
    w2p = jnp.zeros((HP, CP), bf16)
    w2p = w2p.at[:NH, :C].set(w2.reshape(NH, C).astype(bf16))
    w2p = w2p.at[NH:AUG, :C].set(b2.reshape(num, C).astype(bf16))

    xb = x_flat.astype(bf16)

    out_p = pl.pallas_call(
        _ensemble_kernel,
        out_shape=jax.ShapeDtypeStruct((B, CP), f32),
        in_specs=[pl.BlockSpec(memory_space=pltpu.MemorySpace.VMEM)] * 5,
        out_specs=pl.BlockSpec(memory_space=pltpu.MemorySpace.VMEM),
    )(xb, w1p, b1p, s, w2p)
    return out_p[:, :C]


def ensemble_forward(x, params, wei, y=None):
    """Ensemble_model.forward. x: (B, C, H, W) NCHW; wei: (num_classes, num)."""
    B = x.shape[0]
    x_flat = x.reshape(B, -1).astype(jnp.float32)
    num = params["w1"].shape[0]
    if y is not None:
        wei_batch = wei[y].astype(jnp.float32)      # wei_batch[i] = wei[y[i]]
    else:
        wei_batch = jnp.full((B, num), 1.0 / num, dtype=jnp.float32)
    return _ensemble_pallas(x_flat, params["w1"], params["b1"],
                            params["w2"], params["b2"], wei_batch)


def _reference(x, params, wei, y=None):
    B = x.shape[0]
    xf = x.reshape(B, -1).astype(jnp.float32)
    num = params["w1"].shape[0]
    if y is not None:
        wb = wei[y]
    else:
        wb = jnp.full((B, num), 1.0 / num, dtype=jnp.float32)
    out = jnp.zeros((B, params["w2"].shape[2]), jnp.float32)
    for i in range(num):
        h = jnp.maximum(xf @ params["w1"][i] + params["b1"][i], 0.0)
        logit = h @ params["w2"][i] + params["b2"][i]
        out = out + logit * wb[:, i:i + 1]
    return out


if __name__ == "__main__":
    # small, module-consistent shapes
    B, C_in, HH, WW = 8, 4, 8, 8          # NCHW input
    D = C_in * HH * WW                    # 256 flattened features
    HID = 32                              # hidden width of each client MLP
    NUM_CLASSES = 10
    NUM_CLIENTS = 3

    key = jax.random.PRNGKey(0)
    kx, ky, kw1, kb1, kw2, kb2, kwei = jax.random.split(key, 7)

    x = jax.random.normal(kx, (B, C_in, HH, WW), dtype=jnp.float32)
    y = jax.random.randint(ky, (B,), 0, NUM_CLASSES)

    params = {
        "w1": 0.05 * jax.random.normal(kw1, (NUM_CLIENTS, D, HID), jnp.float32),
        "b1": 0.01 * jax.random.normal(kb1, (NUM_CLIENTS, 1, HID), jnp.float32),
        "w2": 0.05 * jax.random.normal(kw2, (NUM_CLIENTS, HID, NUM_CLASSES), jnp.float32),
        "b2": 0.01 * jax.random.normal(kb2, (NUM_CLIENTS, 1, NUM_CLASSES), jnp.float32),
    }
    # per-class ensemble weights, rows sum to 1 (like FL weighting)
    wei = jax.nn.softmax(jax.random.normal(kwei, (NUM_CLASSES, NUM_CLIENTS)), axis=-1)

    # y != None path (per-sample, per-class weighted ensemble)
    out_w = ensemble_forward(x, params, wei, y)
    # y == None path (plain average of client logits)
    out_avg = ensemble_forward(x, params, wei, None)

    jax.block_until_ready(out_w)
    jax.block_until_ready(out_avg)

    ref_w = _reference(x, params, wei, y)
    ref_avg = _reference(x, params, wei, None)
    # bf16 MXU inputs (f32 accumulation) -> slightly looser tolerance than f32
    assert jnp.allclose(out_w, ref_w, atol=1e-2, rtol=1e-2), (
        "max |diff| =", float(jnp.max(jnp.abs(out_w - ref_w))))
    assert jnp.allclose(out_avg, ref_avg, atol=1e-2, rtol=1e-2), (
        "max |diff| =", float(jnp.max(jnp.abs(out_avg - ref_avg))))

    # TODO(synk): get_feature() would reuse the same kernel with the W2 stage
    # removed (return hs sliced per model); omitted since only forward() was
    # requested.
    print("KERNEL_OK")
</pallas_src>

<mosaic_0001>
module attributes {stable_mosaic.version = 11 : i64} {
  func.func @_ensemble_kernel(%arg0: memref<8x256xbf16, #tpu.memory_space<vmem>>, %arg1: memref<256x128xbf16, #tpu.memory_space<vmem>>, %arg2: memref<1x128xf32, #tpu.memory_space<vmem>>, %arg3: memref<8x128xf32, #tpu.memory_space<vmem>>, %arg4: memref<128x128xbf16, #tpu.memory_space<vmem>>, %arg5: memref<8x128xf32, #tpu.memory_space<vmem>>) attributes {dimension_semantics = [], scalar_prefetch = 0 : i64, scratch_operands = 0 : i64, tpu.core_type = #tpu.core_type<tc>} {
    %c0 = arith.constant 0 : index
    %c0_0 = arith.constant 0 : index
    %0 = vector.load %arg0[%c0, %c0_0] : memref<8x256xbf16, #tpu.memory_space<vmem>>, vector<8x256xbf16>
    %c0_1 = arith.constant 0 : index
    %c0_2 = arith.constant 0 : index
    %1 = vector.load %arg1[%c0_1, %c0_2] : memref<256x128xbf16, #tpu.memory_space<vmem>>, vector<256x128xbf16>
    %cst = arith.constant dense<0.000000e+00> : vector<8x128xf32>
    %2 = tpu.matmul %0, %1, %cst {dimension_numbers = #tpu.dot_dimension_numbers<[1], [0], [0], [1], [0, 0, 1, 1], [], []>} : vector<8x256xbf16>, vector<256x128xbf16>, vector<8x128xf32> -> vector<8x128xf32>
    %c0_3 = arith.constant 0 : index
    %c0_4 = arith.constant 0 : index
    %3 = vector.load %arg2[%c0_3, %c0_4] : memref<1x128xf32, #tpu.memory_space<vmem>>, vector<1x128xf32>
    %4 = vector.broadcast %3 : vector<1x128xf32> to vector<8x128xf32>
    %5 = arith.addf %2, %4 : vector<8x128xf32>
    %cst_5 = arith.constant 0.000000e+00 : f32
    %6 = vector.broadcast %cst_5 : f32 to vector<8x128xf32>
    %7 = arith.maximumf %5, %6 : vector<8x128xf32>
    %c0_6 = arith.constant 0 : index
    %c0_7 = arith.constant 0 : index
    %8 = vector.load %arg3[%c0_6, %c0_7] : memref<8x128xf32, #tpu.memory_space<vmem>>, vector<8x128xf32>
    %9 = arith.mulf %7, %8 : vector<8x128xf32>
    %10 = arith.truncf %9 : vector<8x128xf32> to vector<8x128xbf16>
    %c0_8 = arith.constant 0 : index
    %c0_9 = arith.constant 0 : index
    %11 = vector.load %arg4[%c0_8, %c0_9] : memref<128x128xbf16, #tpu.memory_space<vmem>>, vector<128x128xbf16>
    %cst_10 = arith.constant dense<0.000000e+00> : vector<8x128xf32>
    %12 = tpu.matmul %10, %11, %cst_10 {dimension_numbers = #tpu.dot_dimension_numbers<[1], [0], [0], [1], [0, 0, 1, 1], [], []>} : vector<8x128xbf16>, vector<128x128xbf16>, vector<8x128xf32> -> vector<8x128xf32>
    %c0_11 = arith.constant 0 : index
    %c0_12 = arith.constant 0 : index
    %13 = vector.load %arg5[%c0_11, %c0_12] : memref<8x128xf32, #tpu.memory_space<vmem>>, vector<8x128xf32>
    tpu.vector_store %arg5[%c0_11, %c0_12], %12 {strides = array<i32>} : memref<8x128xf32, #tpu.memory_space<vmem>>, vector<8x128xf32>,
    return
  }
}

</mosaic_0001>

<llo_original>
// kernel: _ensemble_pallas.1
$region0: #{_ensemble_pallas.1}
  #allocation0 [shape = 'u32[]', space=smem, size = 0x4, offset = 0x4, fixed_abs, tag = 'smem constant byte address 0x4 - core index']
  #allocation1 [shape = 'u32[144,128]{1,0:T(1,128)}', space=vmem, size = 0x12000, scoped, tag = 'internal scratch']
  %s0 = inlined_call_operand.vmem [shape: bf16[8,256], index: 0, kind: input, shape index: {}]
  %s1 = inlined_call_operand.vmem [shape: bf16[256,128], index: 1, kind: input, shape index: {}]
  %s2 = inlined_call_operand.vmem [shape: f32[1,128], index: 2, kind: input, shape index: {}]
  %s3 = inlined_call_operand.vmem [shape: f32[8,128], index: 3, kind: input, shape index: {}]
  %s4 = inlined_call_operand.vmem [shape: bf16[128,128], index: 4, kind: input, shape index: {}]
  %s5 = inlined_call_operand.hbm [shape: f32[8,128], index: 5, kind: output, shape index: {}]
  %s6 = sld [smem:[#allocation0]]
  $region30: #{_ensemble_pallas.1} parent=0
    _
  %s8 = ssub.s32 1, %s6
  %s9 = scalar_select 0, %s8, %s6
  $region1: #{_ensemble_pallas.1} parent=0
    #allocation2 [shape = 'u8[4096]{0}', space=vmem, size = 0x1000, scoped, tag = 'output window, operand 0, single buffered']
    #allocation3 [shape = 's32[1]{0}', space=sflag, size = 0x4, scoped, tag = 'scoped memory for _ensemble_pallas.1']
    %10 = vsyncpa [#allocation3], 0
    // Predicated region
    $region2: #{_ensemble_pallas.1} parent=1 // pred_check
      _
    $region3: #{_ensemble_pallas.1} parent=1 // pred_check_branch
      %12 = sbr.rel (0) target = $region5
    $region4: #{_ensemble_pallas.1} parent=1 // pred_region
      _
    $region5: #{_ensemble_pallas.1} parent=1 // pred_fallthru
      _
    // Predicated region
    $region6: #{_ensemble_pallas.1} parent=1 // pred_check
      _
    $region7: #{_ensemble_pallas.1} parent=1 // pred_check_branch
      %14 = sbr.rel (0) target = $region9
    $region8: #{_ensemble_pallas.1} parent=1 // pred_region
      _
    $region9: #{_ensemble_pallas.1} parent=1 // pred_fallthru
      _
    // Predicated region
    $region10: #{_ensemble_pallas.1} parent=1 // pred_check
      _
    $region11: #{_ensemble_pallas.1} parent=1 // pred_check_branch
      %16 = sbr.rel (0) target = $region13
    $region12: #{_ensemble_pallas.1} parent=1 // pred_region
      _
    $region13: #{_ensemble_pallas.1} parent=1 // pred_fallthru
      _
    // Predicated region
    $region14: #{_ensemble_pallas.1} parent=1 // pred_check
      _
    $region15: #{_ensemble_pallas.1} parent=1 // pred_check_branch
      %18 = sbr.rel (0) target = $region17
    $region16: #{_ensemble_pallas.1} parent=1 // pred_region
      _
    $region17: #{_ensemble_pallas.1} parent=1 // pred_fallthru
      _
    // Predicated region
    $region18: #{_ensemble_pallas.1} parent=1 // pred_check
      _
    $region19: #{_ensemble_pallas.1} parent=1 // pred_check_branch
      %20 = sbr.rel (0) target = $region21
    $region20: #{_ensemble_pallas.1} parent=1 // pred_region
      _
    $region21: #{_ensemble_pallas.1} parent=1 // pred_fallthru
      _
    %v22 = vld [vmem:[%s0] sm:$0xff]
    %v23 = vld [vmem:[%s1] sm:$0xf]
    %v24 = vld [vmem:[%s1 + $0x4] sm:$0xf]
    %v25 = vld [vmem:[%s1 + $0x8] sm:$0xf]
    %v26 = vld [vmem:[%s1 + $0xc] sm:$0xf]
    %v27 = vld [vmem:[%s1 + $0x10] sm:$0xf]
    %v28 = vld [vmem:[%s1 + $0x14] sm:$0xf]
    %v29 = vld [vmem:[%s1 + $0x18] sm:$0xf]
    %v30 = vld [vmem:[%s1 + $0x1c] sm:$0xf]
    %v31 = vld [vmem:[%s1 + $0x20] sm:$0xf]
    %v32 = vld [vmem:[%s1 + $0x24] sm:$0xf]
    %v33 = vld [vmem:[%s1 + $0x28] sm:$0xf]
    %v34 = vld [vmem:[%s1 + $0x2c] sm:$0xf]
    %v35 = vld [vmem:[%s1 + $0x30] sm:$0xf]
    %v36 = vld [vmem:[%s1 + $0x34] sm:$0xf]
    %v37 = vld [vmem:[%s1 + $0x38] sm:$0xf]
    %v38 = vld [vmem:[%s1 + $0x3c] sm:$0xf]
    %v39 = vld [vmem:[%s1 + $0x40] sm:$0xf]
    %v40 = vld [vmem:[%s1 + $0x44] sm:$0xf]
    %v41 = vld [vmem:[%s1 + $0x48] sm:$0xf]
    %v42 = vld [vmem:[%s1 + $0x4c] sm:$0xf]
    %v43 = vld [vmem:[%s1 + $0x50] sm:$0xf]
    %v44 = vld [vmem:[%s1 + $0x54] sm:$0xf]
    %v45 = vld [vmem:[%s1 + $0x58] sm:$0xf]
    %v46 = vld [vmem:[%s1 + $0x5c] sm:$0xf]
    %v47 = vld [vmem:[%s1 + $0x60] sm:$0xf]
    %v48 = vld [vmem:[%s1 + $0x64] sm:$0xf]
    %v49 = vld [vmem:[%s1 + $0x68] sm:$0xf]
    %v50 = vld [vmem:[%s1 + $0x6c] sm:$0xf]
    %v51 = vld [vmem:[%s1 + $0x70] sm:$0xf]
    %v52 = vld [vmem:[%s1 + $0x74] sm:$0xf]
    %v53 = vld [vmem:[%s1 + $0x78] sm:$0xf]
    %v54 = vld [vmem:[%s1 + $0x7c] sm:$0xf]
    %v55 = vld [vmem:[%s2] sm:$0x1]
    %v57 = vlaneseq
    %v58 = vshrl.u32 %v57, 7
    %v59 = vsub.s32 0, %v58
    %v60 = vrot.slane %v55, %v59
    %v63 = vunpack.c.l.b16 %v22
    %v64 = vunpack.c.h.b16 %v22
    %v65 = vpack.c.b16 %v63, %v63
    %v66 = vpack.c.b16 %v64, %v64
    %v101 = vunpack.c.l.b16 %v23
    %v102 = vunpack.c.l.b16 %v24
    %v103 = vunpack.c.l.b16 %v25
    %v104 = vunpack.c.l.b16 %v26
    %v105 = vunpack.c.l.b16 %v27
    %v106 = vunpack.c.l.b16 %v28
    %v107 = vunpack.c.l.b16 %v29
    %v108 = vunpack.c.l.b16 %v30
    %v109 = vunpack.c.l.b16 %v31
    %v110 = vunpack.c.l.b16 %v32
    %v111 = vunpack.c.l.b16 %v33
    %v112 = vunpack.c.l.b16 %v34
    %v113 = vunpack.c.l.b16 %v35
    %v114 = vunpack.c.l.b16 %v36
    %v115 = vunpack.c.l.b16 %v37
    %v116 = vunpack.c.l.b16 %v38
    %v117 = vunpack.c.l.b16 %v39
    %v118 = vunpack.c.l.b16 %v40
    %v119 = vunpack.c.l.b16 %v41
    %v120 = vunpack.c.l.b16 %v42
    %v121 = vunpack.c.l.b16 %v43
    %v122 = vunpack.c.l.b16 %v44
    %v123 = vunpack.c.l.b16 %v45
    %v124 = vunpack.c.l.b16 %v46
    %v125 = vunpack.c.l.b16 %v47
    %v126 = vunpack.c.l.b16 %v48
    %v127 = vunpack.c.l.b16 %v49
    %v128 = vunpack.c.l.b16 %v50
    %v129 = vunpack.c.l.b16 %v51
    %v130 = vunpack.c.l.b16 %v52
    %v131 = vunpack.c.l.b16 %v53
    %v132 = vunpack.c.l.b16 %v54
    %v133 = vpack.c.b16 %v102, %v101
    %v134 = vpack.c.b16 %v104, %v103
    %v135 = vpack.c.b16 %v106, %v105
    %v136 = vpack.c.b16 %v108, %v107
    %v137 = vpack.c.b16 %v110, %v109
    %v138 = vpack.c.b16 %v112, %v111
    %v139 = vpack.c.b16 %v114, %v113
    %v140 = vpack.c.b16 %v116, %v115
    %v141 = vpack.c.b16 %v118, %v117
    %v142 = vpack.c.b16 %v120, %v119
    %v143 = vpack.c.b16 %v122, %v121
    %v144 = vpack.c.b16 %v124, %v123
    %v145 = vpack.c.b16 %v126, %v125
    %v146 = vpack.c.b16 %v128, %v127
    %v147 = vpack.c.b16 %v130, %v129
    %v148 = vpack.c.b16 %v132, %v131
    %165 = vmatprep.subr.bf16.mxu0 0
    %166 = vmatpush1.bf16.msra.mxu0 %v133
    %167 = vmatprep.subr.bf16.mxu0 0
    %168 = vmatpush1.bf16.msra.mxu0 %v134
    %169 = vmatprep.subr.bf16.mxu0 0
    %170 = vmatpush1.bf16.msra.mxu0 %v135
    %171 = vmatprep.subr.bf16.mxu0 0
    %172 = vmatpush1.bf16.msra.mxu0 %v136
    %173 = vmatprep.subr.bf16.mxu0 0
    %174 = vmatpush1.bf16.msra.mxu0 %v137
    %175 = vmatprep.subr.bf16.mxu0 0
    %176 = vmatpush1.bf16.msra.mxu0 %v138
    %177 = vmatprep.subr.bf16.mxu0 0
    %178 = vmatpush1.bf16.msra.mxu0 %v139
    %179 = vmatprep.subr.bf16.mxu0 0
    %180 = vmatpush1.bf16.msra.mxu0 %v140
    %181 = vmatprep.subr.bf16.mxu0 0
    %182 = vmatpush1.bf16.msra.mxu0 %v141
    %183 = vmatprep.subr.bf16.mxu0 0
    %184 = vmatpush1.bf16.msra.mxu0 %v142
    %185 = vmatprep.subr.bf16.mxu0 0
    %186 = vmatpush1.bf16.msra.mxu0 %v143
    %187 = vmatprep.subr.bf16.mxu0 0
    %188 = vmatpush1.bf16.msra.mxu0 %v144
    %189 = vmatprep.subr.bf16.mxu0 0
    %190 = vmatpush1.bf16.msra.mxu0 %v145
    %191 = vmatprep.subr.bf16.mxu0 0
    %192 = vmatpush1.bf16.msra.mxu0 %v146
    %193 = vmatprep.subr.bf16.mxu0 0
    %194 = vmatpush1.bf16.msra.mxu0 %v147
    %195 = vmatprep.subr.bf16.mxu0 0
    %196 = vmatpush1.bf16.msra.mxu0 %v148
    %197 = vmatprep.mubr.bf16.mxu0 %v66
    %198 = vmatmul.mubr.bf16.gmra.mrb[0].mxu0 %v65
    %v199 = vpop.f32.mrb[0].mxu0
    %v200 = vadd.f32 %v60, %v199
    %v201 = vpop.f32.mrb[0].mxu0
    %v202 = vpop.f32.mrb[0].mxu0
    %v203 = vpop.f32.mrb[0].mxu0
    %204 = vdwg.mxu0
    %v205 = vmax.f32 %v200, 0.0
    %v206 = vld [vmem:[%s3] sm:$0xff]
    %v207 = vmul.f32 %v205, %v206
    %v208 = vpack.c.bf16 %v207, %v207
    %v209 = vld [vmem:[%s4] sm:$0xf]
    %v210 = vld [vmem:[%s4 + $0x4] sm:$0xf]
    %v211 = vld [vmem:[%s4 + $0x8] sm:$0xf]
    %v212 = vld [vmem:[%s4 + $0xc] sm:$0xf]
    %v213 = vld [vmem:[%s4 + $0x10] sm:$0xf]
    %v214 = vld [vmem:[%s4 + $0x14] sm:$0xf]
    %v215 = vld [vmem:[%s4 + $0x18] sm:$0xf]
    %v216 = vld [vmem:[%s4 + $0x1c] sm:$0xf]
    %v217 = vld [vmem:[%s4 + $0x20] sm:$0xf]
    %v218 = vld [vmem:[%s4 + $0x24] sm:$0xf]
    %v219 = vld [vmem:[%s4 + $0x28] sm:$0xf]
    %v220 = vld [vmem:[%s4 + $0x2c] sm:$0xf]
    %v221 = vld [vmem:[%s4 + $0x30] sm:$0xf]
    %v222 = vld [vmem:[%s4 + $0x34] sm:$0xf]
    %v223 = vld [vmem:[%s4 + $0x38] sm:$0xf]
    %v224 = vld [vmem:[%s4 + $0x3c] sm:$0xf]
    %v241 = vunpack.c.l.b16 %v209
    %v242 = vunpack.c.l.b16 %v210
    %v243 = vunpack.c.l.b16 %v211
    %v244 = vunpack.c.l.b16 %v212
    %v245 = vunpack.c.l.b16 %v213
    %v246 = vunpack.c.l.b16 %v214
    %v247 = vunpack.c.l.b16 %v215
    %v248 = vunpack.c.l.b16 %v216
    %v249 = vunpack.c.l.b16 %v217
    %v250 = vunpack.c.l.b16 %v218
    %v251 = vunpack.c.l.b16 %v219
    %v252 = vunpack.c.l.b16 %v220
    %v253 = vunpack.c.l.b16 %v221
    %v254 = vunpack.c.l.b16 %v222
    %v255 = vunpack.c.l.b16 %v223
    %v256 = vunpack.c.l.b16 %v224
    %v257 = vpack.c.b16 %v242, %v241
    %v258 = vpack.c.b16 %v244, %v243
    %v259 = vpack.c.b16 %v246, %v245
    %v260 = vpack.c.b16 %v248, %v247
    %v261 = vpack.c.b16 %v250, %v249
    %v262 = vpack.c.b16 %v252, %v251
    %v263 = vpack.c.b16 %v254, %v253
    %v264 = vpack.c.b16 %v256, %v255
    %273 = vmatprep.subr.bf16.mxu0 0
    %274 = vmatpush1.bf16.msra.mxu0 %v257
    %275 = vmatprep.subr.bf16.mxu0 0
    %276 = vmatpush1.bf16.msra.mxu0 %v258
    %277 = vmatprep.subr.bf16.mxu0 0
    %278 = vmatpush1.bf16.msra.mxu0 %v259
    %279 = vmatprep.subr.bf16.mxu0 0
    %280 = vmatpush1.bf16.msra.mxu0 %v260
    %281 = vmatprep.subr.bf16.mxu0 0
    %282 = vmatpush1.bf16.msra.mxu0 %v261
    %283 = vmatprep.subr.bf16.mxu0 0
    %284 = vmatpush1.bf16.msra.mxu0 %v262
    %285 = vmatprep.subr.bf16.mxu0 0
    %286 = vmatpush1.bf16.msra.mxu0 %v263
    %287 = vmatprep.subr.bf16.mxu0 0
    %288 = vmatpush1.bf16.msra.mxu0 %v264
    %289 = vmatprep.subr.bf16.mxu0 0
    %290 = vmatpush1.bf16.msra.mxu0 0
    %291 = vmatprep.subr.bf16.mxu0 0
    %292 = vmatpush1.bf16.msra.mxu0 0
    %293 = vmatprep.subr.bf16.mxu0 0
    %294 = vmatpush1.bf16.msra.mxu0 0
    %295 = vmatprep.subr.bf16.mxu0 0
    %296 = vmatpush1.bf16.msra.mxu0 0
    %297 = vmatprep.subr.bf16.mxu0 0
    %298 = vmatpush1.bf16.msra.mxu0 0
    %299 = vmatprep.subr.bf16.mxu0 0
    %300 = vmatpush1.bf16.msra.mxu0 0
    %301 = vmatprep.subr.bf16.mxu0 0
    %302 = vmatpush1.bf16.msra.mxu0 0
    %303 = vmatprep.subr.bf16.mxu0 0
    %304 = vmatpush1.bf16.msra.mxu0 0
    %305 = vmatprep.mubr.bf16.mxu0 0
    %306 = vmatmul.mubr.bf16.gmra.mrb[0].mxu0 %v208
    %v307 = vpop.f32.mrb[0].mxu0
    %v308 = vadd.f32 0.0, %v307
    %v309 = vpop.f32.mrb[0].mxu0
    %v310 = vpop.f32.mrb[0].mxu0
    %v311 = vpop.f32.mrb[0].mxu0
    %312 = vdwg.mxu0
    %313 = vst [vmem:[#allocation2] sm:$0xff] %v308
    // Predicated region
    $region22: #{_ensemble_pallas.1} parent=1 // pred_check
      _
    $region23: #{_ensemble_pallas.1} parent=1 // pred_check_branch
      %315 = sbr.rel (0) target = $region25
    $region24: #{_ensemble_pallas.1} parent=1 // pred_region
      %s317 = ssub.s32 128, 128
      %318 = vsyncadd [#allocation3], %s317
      %s320 = sshll.u32 [#allocation2], 4
      %s321 = int_to_ptr.vmem [resolvable:$true] %s320
      %323 = dma.vmem_to_hbm [thread:$0]  %s321, 128, %s5, [#allocation3]
    $region25: #{_ensemble_pallas.1} parent=1 // pred_fallthru
      _
    // Predicated region
    $region26: #{_ensemble_pallas.1} parent=1 // pred_check
      _
    $region27: #{_ensemble_pallas.1} parent=1 // pred_check_branch
      %325 = sbr.rel (0) target = $region29
    $region28: #{_ensemble_pallas.1} parent=1 // pred_region
      %326 = dma.done [#allocation3], 128
    $region29: #{_ensemble_pallas.1} parent=1 // pred_fallthru
      _
    %327 = vsyncpa [#allocation3], 1

</llo_original>
